<compile_context>
chip_gen: v6e
topology: v6e:2x2x1
jax: 0.10.0
libtpu: 0.0.40
codegen_flags: <defaults>
</compile_context>

<pallas_src>
import functools

import jax
import jax.numpy as jnp
from jax.experimental import pallas as pl
from jax.experimental.pallas import tpu as pltpu

BN_EPS = 1e-5  # nn.BatchNorm1d default eps


def _mlp_kernel(n_layers, x_ref, *refs):
    """Fused (Linear -> BatchNorm1d -> ReLU)*L stack, last ReLU dropped.

    refs = (W1t, b1, g1, beta1, ..., WLt, bL, gL, betaL, out_ref) where
    Wlt is the PyTorch weight transposed to (in, out) and b/g/beta are (1, out).
    """
    out_ref = refs[-1]
    p = refs[:-1]

    h = x_ref[...].astype(jnp.float32)                     # (B, D0)
    for l in range(n_layers):                              # unrolled at trace time
        wt = p[4 * l][...].astype(jnp.float32)             # (K, N)
        b = p[4 * l + 1][...].astype(jnp.float32)          # (1, N)
        gamma = p[4 * l + 2][...].astype(jnp.float32)      # (1, N)
        beta = p[4 * l + 3][...].astype(jnp.float32)       # (1, N)

        # Linear: MXU matmul, f32 accumulation, lane axis = output features.
        y = jnp.dot(h, wt, preferred_element_type=jnp.float32) + b

        # BatchNorm1d (train-mode): per-feature batch stats, biased variance,
        # fused rsqrt instead of sqrt + divide.
        mean = jnp.mean(y, axis=0, keepdims=True)
        var = jnp.mean(jnp.square(y - mean), axis=0, keepdims=True)
        y = (y - mean) * jax.lax.rsqrt(var + BN_EPS) * gamma + beta

        # ReLU on all but the last layer (its ReLU is popped in _make_layers).
        if l < n_layers - 1:
            y = jnp.maximum(y, 0.0)
        h = y

    out_ref[...] = h.astype(out_ref.dtype)


def mlp_forward(x, params):
    """MLP forward.  params: list of (Wt(K,N), b(N,), gamma(N,), beta(N,))."""
    n_layers = len(params)
    batch = x.shape[0]
    out_features = params[-1][0].shape[1]

    flat_inputs = [x]
    flops = 0
    transcendentals = 0
    bytes_accessed = x.size * x.dtype.itemsize
    for wt, b, gamma, beta in params:
        k, n = wt.shape
        flat_inputs += [wt, b.reshape(1, n), gamma.reshape(1, n),
                        beta.reshape(1, n)]
        flops += 2 * batch * k * n + 8 * batch * n   # matmul + BN/ReLU elementwise
        transcendentals += n                         # one rsqrt per output feature
        bytes_accessed += (wt.size + 3 * n) * wt.dtype.itemsize
    bytes_accessed += batch * out_features * x.dtype.itemsize

    vmem_full = pl.BlockSpec(memory_space=pltpu.MemorySpace.VMEM)  # whole array in VMEM
    return pl.pallas_call(
        functools.partial(_mlp_kernel, n_layers),
        out_shape=jax.ShapeDtypeStruct((batch, out_features), x.dtype),
        in_specs=[vmem_full] * len(flat_inputs),
        out_specs=vmem_full,
        cost_estimate=pl.CostEstimate(
            flops=int(flops),
            transcendentals=int(transcendentals),
            bytes_accessed=int(bytes_accessed),
        ),
    )(*flat_inputs)


def _reference(x, params):
    """Pure-JAX reference for MLP.forward (train-mode BatchNorm1d)."""
    h = x.astype(jnp.float32)
    n_layers = len(params)
    for l, (wt, b, gamma, beta) in enumerate(params):
        y = h @ wt.astype(jnp.float32) + b.astype(jnp.float32)
        mean = jnp.mean(y, axis=0, keepdims=True)
        var = jnp.mean((y - mean) ** 2, axis=0, keepdims=True)
        y = (y - mean) / jnp.sqrt(var + BN_EPS) * gamma + beta
        if l < n_layers - 1:
            y = jnp.maximum(y, 0.0)
        h = y
    return h.astype(x.dtype)


def _init_params(key, layer_szs, dtype=jnp.float32):
    """Per-layer (W^T, bias, gamma, beta), mimicking PyTorch default init."""
    params = []
    for i in range(len(layer_szs) - 1):
        fan_in, fan_out = layer_szs[i], layer_szs[i + 1]
        key, kw, kb = jax.random.split(key, 3)
        bound = 1.0 / (fan_in ** 0.5)
        wt = jax.random.uniform(kw, (fan_in, fan_out), dtype, -bound, bound)  # = W.T
        b = jax.random.uniform(kb, (fan_out,), dtype, -bound, bound)
        gamma = jnp.ones((fan_out,), dtype)   # BatchNorm1d weight init
        beta = jnp.zeros((fan_out,), dtype)   # BatchNorm1d bias init
        params.append((wt, b, gamma, beta))
    return params


if __name__ == "__main__":
    key = jax.random.PRNGKey(0)
    layer_szs = [32, 64, 16]   # MLP([32, 64, 16]): Linear/BN/ReLU, Linear/BN
    batch = 8                  # BN train mode needs batch > 1

    kx, kp = jax.random.split(key)
    x = jax.random.normal(kx, (batch, layer_szs[0]), dtype=jnp.float32)
    params = _init_params(kp, layer_szs)

    out = mlp_forward(x, params)
    jax.block_until_ready(out)

    ref = _reference(x, params)
    assert out.shape == (batch, layer_szs[-1]) and out.dtype == x.dtype
    # Tolerance absorbs possible MXU f32 default-precision differences between
    # the Mosaic (in-kernel) and XLA (reference) matmul lowerings; structural
    # bugs (wrong ReLU placement, wrong BN stats) are O(0.1+) and still caught.
    assert jnp.allclose(out, ref, atol=1e-2, rtol=1e-2), (
        float(jnp.max(jnp.abs(out - ref))))
    print("KERNEL_OK")
</pallas_src>

<mosaic_0001>
module attributes {stable_mosaic.version = 11 : i64} {
  func.func @_mlp_kernel(%arg0: memref<8x32xf32, #tpu.memory_space<vmem>>, %arg1: memref<32x64xf32, #tpu.memory_space<vmem>>, %arg2: memref<1x64xf32, #tpu.memory_space<vmem>>, %arg3: memref<1x64xf32, #tpu.memory_space<vmem>>, %arg4: memref<1x64xf32, #tpu.memory_space<vmem>>, %arg5: memref<64x16xf32, #tpu.memory_space<vmem>>, %arg6: memref<1x16xf32, #tpu.memory_space<vmem>>, %arg7: memref<1x16xf32, #tpu.memory_space<vmem>>, %arg8: memref<1x16xf32, #tpu.memory_space<vmem>>, %arg9: memref<8x16xf32, #tpu.memory_space<vmem>>) attributes {dimension_semantics = [], scalar_prefetch = 0 : i64, scratch_operands = 0 : i64, tpu.core_type = #tpu.core_type<tc>} {
    %c0 = arith.constant 0 : index
    %c0_0 = arith.constant 0 : index
    %0 = vector.load %arg0[%c0, %c0_0] : memref<8x32xf32, #tpu.memory_space<vmem>>, vector<8x32xf32>
    %c0_1 = arith.constant 0 : index
    %c0_2 = arith.constant 0 : index
    %1 = vector.load %arg1[%c0_1, %c0_2] : memref<32x64xf32, #tpu.memory_space<vmem>>, vector<32x64xf32>
    %c0_3 = arith.constant 0 : index
    %c0_4 = arith.constant 0 : index
    %2 = vector.load %arg2[%c0_3, %c0_4] : memref<1x64xf32, #tpu.memory_space<vmem>>, vector<1x64xf32>
    %c0_5 = arith.constant 0 : index
    %c0_6 = arith.constant 0 : index
    %3 = vector.load %arg3[%c0_5, %c0_6] : memref<1x64xf32, #tpu.memory_space<vmem>>, vector<1x64xf32>
    %c0_7 = arith.constant 0 : index
    %c0_8 = arith.constant 0 : index
    %4 = vector.load %arg4[%c0_7, %c0_8] : memref<1x64xf32, #tpu.memory_space<vmem>>, vector<1x64xf32>
    %cst = arith.constant dense<0.000000e+00> : vector<8x64xf32>
    %5 = tpu.matmul %0, %1, %cst {dimension_numbers = #tpu.dot_dimension_numbers<[1], [0], [0], [1], [0, 0, 1, 1], [], []>} : vector<8x32xf32>, vector<32x64xf32>, vector<8x64xf32> -> vector<8x64xf32>
    %6 = vector.broadcast %2 : vector<1x64xf32> to vector<8x64xf32>
    %7 = arith.addf %5, %6 : vector<8x64xf32>
    %cst_9 = arith.constant dense<0.000000e+00> : vector<64xf32>
    %8 = vector.multi_reduction <add>, %7, %cst_9 [0] : vector<8x64xf32> to vector<64xf32>
    %9 = vector.shape_cast %8 : vector<64xf32> to vector<1x64xf32>
    %cst_10 = arith.constant 8.000000e+00 : f32
    %10 = vector.broadcast %cst_10 : f32 to vector<1x64xf32>
    %11 = arith.divf %9, %10 : vector<1x64xf32>
    %12 = vector.broadcast %11 : vector<1x64xf32> to vector<8x64xf32>
    %13 = arith.subf %7, %12 : vector<8x64xf32>
    %14 = arith.mulf %13, %13 : vector<8x64xf32>
    %cst_11 = arith.constant dense<0.000000e+00> : vector<64xf32>
    %15 = vector.multi_reduction <add>, %14, %cst_11 [0] : vector<8x64xf32> to vector<64xf32>
    %16 = vector.shape_cast %15 : vector<64xf32> to vector<1x64xf32>
    %cst_12 = arith.constant 8.000000e+00 : f32
    %17 = vector.broadcast %cst_12 : f32 to vector<1x64xf32>
    %18 = arith.divf %16, %17 : vector<1x64xf32>
    %19 = vector.broadcast %11 : vector<1x64xf32> to vector<8x64xf32>
    %20 = arith.subf %7, %19 : vector<8x64xf32>
    %cst_13 = arith.constant 9.99999974E-6 : f32
    %21 = vector.broadcast %cst_13 : f32 to vector<1x64xf32>
    %22 = arith.addf %18, %21 : vector<1x64xf32>
    %23 = math.rsqrt %22 : vector<1x64xf32>
    %24 = vector.broadcast %23 : vector<1x64xf32> to vector<8x64xf32>
    %25 = arith.mulf %20, %24 : vector<8x64xf32>
    %26 = vector.broadcast %3 : vector<1x64xf32> to vector<8x64xf32>
    %27 = arith.mulf %25, %26 : vector<8x64xf32>
    %28 = vector.broadcast %4 : vector<1x64xf32> to vector<8x64xf32>
    %29 = arith.addf %27, %28 : vector<8x64xf32>
    %cst_14 = arith.constant 0.000000e+00 : f32
    %30 = vector.broadcast %cst_14 : f32 to vector<8x64xf32>
    %31 = arith.maximumf %29, %30 : vector<8x64xf32>
    %c0_15 = arith.constant 0 : index
    %c0_16 = arith.constant 0 : index
    %32 = vector.load %arg5[%c0_15, %c0_16] : memref<64x16xf32, #tpu.memory_space<vmem>>, vector<64x16xf32>
    %c0_17 = arith.constant 0 : index
    %c0_18 = arith.constant 0 : index
    %33 = vector.load %arg6[%c0_17, %c0_18] : memref<1x16xf32, #tpu.memory_space<vmem>>, vector<1x16xf32>
    %c0_19 = arith.constant 0 : index
    %c0_20 = arith.constant 0 : index
    %34 = vector.load %arg7[%c0_19, %c0_20] : memref<1x16xf32, #tpu.memory_space<vmem>>, vector<1x16xf32>
    %c0_21 = arith.constant 0 : index
    %c0_22 = arith.constant 0 : index
    %35 = vector.load %arg8[%c0_21, %c0_22] : memref<1x16xf32, #tpu.memory_space<vmem>>, vector<1x16xf32>
    %cst_23 = arith.constant dense<0.000000e+00> : vector<8x16xf32>
    %36 = tpu.matmul %31, %32, %cst_23 {dimension_numbers = #tpu.dot_dimension_numbers<[1], [0], [0], [1], [0, 0, 1, 1], [], []>} : vector<8x64xf32>, vector<64x16xf32>, vector<8x16xf32> -> vector<8x16xf32>
    %37 = vector.broadcast %33 : vector<1x16xf32> to vector<8x16xf32>
    %38 = arith.addf %36, %37 : vector<8x16xf32>
    %cst_24 = arith.constant dense<0.000000e+00> : vector<16xf32>
    %39 = vector.multi_reduction <add>, %38, %cst_24 [0] : vector<8x16xf32> to vector<16xf32>
    %40 = vector.shape_cast %39 : vector<16xf32> to vector<1x16xf32>
    %cst_25 = arith.constant 8.000000e+00 : f32
    %41 = vector.broadcast %cst_25 : f32 to vector<1x16xf32>
    %42 = arith.divf %40, %41 : vector<1x16xf32>
    %43 = vector.broadcast %42 : vector<1x16xf32> to vector<8x16xf32>
    %44 = arith.subf %38, %43 : vector<8x16xf32>
    %45 = arith.mulf %44, %44 : vector<8x16xf32>
    %cst_26 = arith.constant dense<0.000000e+00> : vector<16xf32>
    %46 = vector.multi_reduction <add>, %45, %cst_26 [0] : vector<8x16xf32> to vector<16xf32>
    %47 = vector.shape_cast %46 : vector<16xf32> to vector<1x16xf32>
    %cst_27 = arith.constant 8.000000e+00 : f32
    %48 = vector.broadcast %cst_27 : f32 to vector<1x16xf32>
    %49 = arith.divf %47, %48 : vector<1x16xf32>
    %50 = vector.broadcast %42 : vector<1x16xf32> to vector<8x16xf32>
    %51 = arith.subf %38, %50 : vector<8x16xf32>
    %cst_28 = arith.constant 9.99999974E-6 : f32
    %52 = vector.broadcast %cst_28 : f32 to vector<1x16xf32>
    %53 = arith.addf %49, %52 : vector<1x16xf32>
    %54 = math.rsqrt %53 : vector<1x16xf32>
    %55 = vector.broadcast %54 : vector<1x16xf32> to vector<8x16xf32>
    %56 = arith.mulf %51, %55 : vector<8x16xf32>
    %57 = vector.broadcast %34 : vector<1x16xf32> to vector<8x16xf32>
    %58 = arith.mulf %56, %57 : vector<8x16xf32>
    %59 = vector.broadcast %35 : vector<1x16xf32> to vector<8x16xf32>
    %60 = arith.addf %58, %59 : vector<8x16xf32>
    %c0_29 = arith.constant 0 : index
    %c0_30 = arith.constant 0 : index
    %61 = vector.load %arg9[%c0_29, %c0_30] : memref<8x16xf32, #tpu.memory_space<vmem>>, vector<8x16xf32>
    tpu.vector_store %arg9[%c0_29, %c0_30], %60 {strides = array<i32>} : memref<8x16xf32, #tpu.memory_space<vmem>>, vector<8x16xf32>,
    return
  }
}

</mosaic_0001>

<llo_original>
// kernel: tpu_custom_call.1
$region0: #{tpu_custom_call.1}
  #allocation0 [shape = 'u32[]', space=smem, size = 0x4, offset = 0x4, fixed_abs, tag = 'smem constant byte address 0x4 - core index']
  #allocation1 [shape = 'u32[144,128]{1,0:T(1,128)}', space=vmem, size = 0x12000, scoped, tag = 'internal scratch']
  %s0 = inlined_call_operand.vmem [shape: f32[8,32], index: 0, kind: input, shape index: {}]
  %s1 = inlined_call_operand.vmem [shape: f32[32,64], index: 1, kind: input, shape index: {}]
  %s2 = inlined_call_operand.vmem [shape: f32[1,64], index: 2, kind: input, shape index: {}]
  %s3 = inlined_call_operand.vmem [shape: f32[1,64], index: 3, kind: input, shape index: {}]
  %s4 = inlined_call_operand.vmem [shape: f32[1,64], index: 4, kind: input, shape index: {}]
  %s5 = inlined_call_operand.vmem [shape: f32[64,16], index: 5, kind: input, shape index: {}]
  %s6 = inlined_call_operand.vmem [shape: f32[1,16], index: 6, kind: input, shape index: {}]
  %s7 = inlined_call_operand.vmem [shape: f32[1,16], index: 7, kind: input, shape index: {}]
  %s8 = inlined_call_operand.vmem [shape: f32[1,16], index: 8, kind: input, shape index: {}]
  %s9 = inlined_call_operand.hbm [shape: f32[8,16], index: 9, kind: output, shape index: {}]
  %s10 = sld [smem:[#allocation0]]
  $region46: #{tpu_custom_call.1} parent=0
    _
  %s12 = ssub.s32 1, %s10
  %s13 = scalar_select 0, %s12, %s10
  $region1: #{tpu_custom_call.1} parent=0
    #allocation2 [shape = 'u8[4096]{0}', space=vmem, size = 0x1000, scoped, tag = 'output window, operand 0, single buffered']
    #allocation3 [shape = 's32[1]{0}', space=sflag, size = 0x4, scoped, tag = 'scoped memory for tpu_custom_call.1']
    %14 = vsyncpa [#allocation3], 0
    // Predicated region
    $region2: #{tpu_custom_call.1} parent=1 // pred_check
      _
    $region3: #{tpu_custom_call.1} parent=1 // pred_check_branch
      %16 = sbr.rel (0) target = $region5
    $region4: #{tpu_custom_call.1} parent=1 // pred_region
      _
    $region5: #{tpu_custom_call.1} parent=1 // pred_fallthru
      _
    // Predicated region
    $region6: #{tpu_custom_call.1} parent=1 // pred_check
      _
    $region7: #{tpu_custom_call.1} parent=1 // pred_check_branch
      %18 = sbr.rel (0) target = $region9
    $region8: #{tpu_custom_call.1} parent=1 // pred_region
      _
    $region9: #{tpu_custom_call.1} parent=1 // pred_fallthru
      _
    // Predicated region
    $region10: #{tpu_custom_call.1} parent=1 // pred_check
      _
    $region11: #{tpu_custom_call.1} parent=1 // pred_check_branch
      %20 = sbr.rel (0) target = $region13
    $region12: #{tpu_custom_call.1} parent=1 // pred_region
      _
    $region13: #{tpu_custom_call.1} parent=1 // pred_fallthru
      _
    // Predicated region
    $region14: #{tpu_custom_call.1} parent=1 // pred_check
      _
    $region15: #{tpu_custom_call.1} parent=1 // pred_check_branch
      %22 = sbr.rel (0) target = $region17
    $region16: #{tpu_custom_call.1} parent=1 // pred_region
      _
    $region17: #{tpu_custom_call.1} parent=1 // pred_fallthru
      _
    // Predicated region
    $region18: #{tpu_custom_call.1} parent=1 // pred_check
      _
    $region19: #{tpu_custom_call.1} parent=1 // pred_check_branch
      %24 = sbr.rel (0) target = $region21
    $region20: #{tpu_custom_call.1} parent=1 // pred_region
      _
    $region21: #{tpu_custom_call.1} parent=1 // pred_fallthru
      _
    // Predicated region
    $region22: #{tpu_custom_call.1} parent=1 // pred_check
      _
    $region23: #{tpu_custom_call.1} parent=1 // pred_check_branch
      %26 = sbr.rel (0) target = $region25
    $region24: #{tpu_custom_call.1} parent=1 // pred_region
      _
    $region25: #{tpu_custom_call.1} parent=1 // pred_fallthru
      _
    // Predicated region
    $region26: #{tpu_custom_call.1} parent=1 // pred_check
      _
    $region27: #{tpu_custom_call.1} parent=1 // pred_check_branch
      %28 = sbr.rel (0) target = $region29
    $region28: #{tpu_custom_call.1} parent=1 // pred_region
      _
    $region29: #{tpu_custom_call.1} parent=1 // pred_fallthru
      _
    // Predicated region
    $region30: #{tpu_custom_call.1} parent=1 // pred_check
      _
    $region31: #{tpu_custom_call.1} parent=1 // pred_check_branch
      %30 = sbr.rel (0) target = $region33
    $region32: #{tpu_custom_call.1} parent=1 // pred_region
      _
    $region33: #{tpu_custom_call.1} parent=1 // pred_fallthru
      _
    // Predicated region
    $region34: #{tpu_custom_call.1} parent=1 // pred_check
      _
    $region35: #{tpu_custom_call.1} parent=1 // pred_check_branch
      %32 = sbr.rel (0) target = $region37
    $region36: #{tpu_custom_call.1} parent=1 // pred_region
      _
    $region37: #{tpu_custom_call.1} parent=1 // pred_fallthru
      _
    %v33 = vld [vmem:[%s0] sm:$0xff]
    %v34 = vld [vmem:[%s1] sm:$0xff]
    %v35 = vld [vmem:[%s1 + $0x8] sm:$0xff]
    %v36 = vld [vmem:[%s1 + $0x10] sm:$0xff]
    %v37 = vld [vmem:[%s1 + $0x18] sm:$0xff]
    %v38 = vld [vmem:[%s2] sm:$0x1]
    %v39 = vld [vmem:[%s3] sm:$0x1]
    %v40 = vld [vmem:[%s4] sm:$0x1]
    %v42 = vlaneseq
    %v43 = vshrl.u32 %v42, 7
    %v44 = vsub.s32 0, %v43
    %v45 = vrot.slane %v38, %v44
    %vm47 = vcmask 261120
    %v49 = vsel %vm47, %v33, 0
    %51 = vmatprep.subr.mxu0 0.0
    %52 = vmatpush1.msra.mxu0 0.0
    %53 = vmatprep.subr.mxu0 0.0
    %54 = vmatpush1.msra.mxu0 0.0
    %55 = vmatprep.subr.mxu0 0.0
    %56 = vmatpush1.msra.mxu0 0.0
    %57 = vmatprep.subr.mxu0 0.0
    %58 = vmatpush1.msra.mxu0 0.0
    %59 = vmatprep.subr.mxu0 0.0
    %60 = vmatpush1.msra.mxu0 0.0
    %61 = vmatprep.subr.mxu0 0.0
    %62 = vmatpush1.msra.mxu0 0.0
    %63 = vmatprep.subr.mxu0 0.0
    %64 = vmatpush1.msra.mxu0 0.0
    %65 = vmatprep.subr.mxu0 0.0
    %66 = vmatpush1.msra.mxu0 0.0
    %67 = vmatprep.subr.mxu0 0.0
    %68 = vmatpush1.msra.mxu0 0.0
    %69 = vmatprep.subr.mxu0 0.0
    %70 = vmatpush1.msra.mxu0 0.0
    %71 = vmatprep.subr.mxu0 0.0
    %72 = vmatpush1.msra.mxu0 0.0
    %73 = vmatprep.subr.mxu0 0.0
    %74 = vmatpush1.msra.mxu0 0.0
    %75 = vmatprep.subr.mxu0 0.0
    %76 = vmatpush1.msra.mxu0 %v37
    %77 = vmatprep.subr.mxu0 0.0
    %78 = vmatpush1.msra.mxu0 %v36
    %79 = vmatprep.subr.mxu0 0.0
    %80 = vmatpush1.msra.mxu0 %v35
    %81 = vmatprep.subr.mxu0 0.0
    %82 = vmatpush1.msra.mxu0 %v34
    %83 = vmatprep.subr.mxu0 0.0
    %84 = vmatpush2.msra.mxu0 0.0
    %85 = vmatprep.subr.mxu0 0.0
    %86 = vmatpush2.msra.mxu0 0.0
    %87 = vmatprep.subr.mxu0 0.0
    %88 = vmatpush2.msra.mxu0 0.0
    %89 = vmatprep.subr.mxu0 0.0
    %90 = vmatpush2.msra.mxu0 0.0
    %91 = vmatprep.subr.mxu0 0.0
    %92 = vmatpush2.msra.mxu0 0.0
    %93 = vmatprep.subr.mxu0 0.0
    %94 = vmatpush2.msra.mxu0 0.0
    %95 = vmatprep.subr.mxu0 0.0
    %96 = vmatpush2.msra.mxu0 0.0
    %97 = vmatprep.subr.mxu0 0.0
    %98 = vmatpush2.msra.mxu0 0.0
    %99 = vmatprep.subr.mxu0 0.0
    %100 = vmatpush2.msra.mxu0 0.0
    %101 = vmatprep.subr.mxu0 0.0
    %102 = vmatpush2.msra.mxu0 0.0
    %103 = vmatprep.subr.mxu0 0.0
    %104 = vmatpush2.msra.mxu0 0.0
    %105 = vmatprep.subr.mxu0 0.0
    %106 = vmatpush2.msra.mxu0 0.0
    %107 = vmatprep.subr.mxu0 0.0
    %108 = vmatpush2.msra.mxu0 0.0
    %109 = vmatprep.subr.mxu0 0.0
    %110 = vmatpush2.msra.mxu0 0.0
    %111 = vmatprep.subr.mxu0 0.0
    %112 = vmatpush2.msra.mxu0 0.0
    %113 = vmatprep.subr.mxu0 0.0
    %114 = vmatpush2.msra.mxu0 0.0
    %115 = vmatprep.mubr.f32.mxu0 0.0
    %116 = vmatmul.mubr.f32.gmra.mxu0 %v49
    %v117 = vpop.f32.mrf.mxu0
    %v118 = vadd.f32 %v45, %v117
    %v119 = vpop.f32.mrf.mxu0
    %120 = vdwg.mxu0
    %vm121 = vcmask 523264
    %v122 = vsel %vm121, %v118, 0.0
    %v123 = vrot.slane %v122, 4
    %v124 = vadd.f32 %v122, %v123
    %v125 = vrot.slane %v124, 2
    %v126 = vadd.f32 %v124, %v125
    %v127 = vrot.slane %v126, 1
    %v128 = vadd.f32 %v126, %v127
    %v129 = vrcp.pop 8.0
    %v130 = vmul.f32 %v128, %v129
    %v131 = vsub.f32 %v118, %v130
    %v132 = vmul.f32 %v131, %v131
    %v133 = vsel %vm121, %v132, 0.0
    %v134 = vrot.slane %v133, 4
    %v135 = vadd.f32 %v133, %v134
    %v136 = vrot.slane %v135, 2
    %v137 = vadd.f32 %v135, %v136
    %v138 = vrot.slane %v137, 1
    %v139 = vadd.f32 %v137, %v138
    %v140 = vmul.f32 %v139, %v129
    %v141 = vadd.f32 %v140, 1e-05
    %v142 = vrsqrt.pop %v141
    %v143 = vmul.f32 %v131, %v142
    %v145 = vlaneseq
    %v146 = vshrl.u32 %v145, 7
    %v147 = vsub.s32 0, %v146
    %v148 = vrot.slane %v39, %v147
    %v150 = vmul.f32 %v143, %v148
    %v152 = vlaneseq
    %v153 = vshrl.u32 %v152, 7
    %v154 = vsub.s32 0, %v153
    %v155 = vrot.slane %v40, %v154
    %v157 = vadd.f32 %v150, %v155
    %v158 = vmax.f32 %v157, 0.0
    %v159 = vld [vmem:[%s5] sm:$0xff]
    %v160 = vld [vmem:[%s5 + $0x8] sm:$0xff]
    %v161 = vld [vmem:[%s5 + $0x10] sm:$0xff]
    %v162 = vld [vmem:[%s5 + $0x18] sm:$0xff]
    %v163 = vld [vmem:[%s5 + $0x20] sm:$0xff]
    %v164 = vld [vmem:[%s5 + $0x28] sm:$0xff]
    %v165 = vld [vmem:[%s5 + $0x30] sm:$0xff]
    %v166 = vld [vmem:[%s5 + $0x38] sm:$0xff]
    %v167 = vld [vmem:[%s6] sm:$0x1]
    %v168 = vld [vmem:[%s7] sm:$0x1]
    %v169 = vld [vmem:[%s8] sm:$0x1]
    %v171 = vlaneseq
    %v172 = vshrl.u32 %v171, 7
    %v173 = vsub.s32 0, %v172
    %v174 = vrot.slane %v167, %v173
    %v177 = vsel %vm121, %v158, 0
    %179 = vmatprep.subr.mxu0 0.0
    %180 = vmatpush1.msra.mxu0 0.0
    %181 = vmatprep.subr.mxu0 0.0
    %182 = vmatpush1.msra.mxu0 0.0
    %183 = vmatprep.subr.mxu0 0.0
    %184 = vmatpush1.msra.mxu0 0.0
    %185 = vmatprep.subr.mxu0 0.0
    %186 = vmatpush1.msra.mxu0 0.0
    %187 = vmatprep.subr.mxu0 0.0
    %188 = vmatpush1.msra.mxu0 0.0
    %189 = vmatprep.subr.mxu0 0.0
    %190 = vmatpush1.msra.mxu0 0.0
    %191 = vmatprep.subr.mxu0 0.0
    %192 = vmatpush1.msra.mxu0 0.0
    %193 = vmatprep.subr.mxu0 0.0
    %194 = vmatpush1.msra.mxu0 0.0
    %195 = vmatprep.subr.mxu0 0.0
    %196 = vmatpush1.msra.mxu0 %v166
    %197 = vmatprep.subr.mxu0 0.0
    %198 = vmatpush1.msra.mxu0 %v165
    %199 = vmatprep.subr.mxu0 0.0
    %200 = vmatpush1.msra.mxu0 %v164
    %201 = vmatprep.subr.mxu0 0.0
    %202 = vmatpush1.msra.mxu0 %v163
    %203 = vmatprep.subr.mxu0 0.0
    %204 = vmatpush1.msra.mxu0 %v162
    %205 = vmatprep.subr.mxu0 0.0
    %206 = vmatpush1.msra.mxu0 %v161
    %207 = vmatprep.subr.mxu0 0.0
    %208 = vmatpush1.msra.mxu0 %v160
    %209 = vmatprep.subr.mxu0 0.0
    %210 = vmatpush1.msra.mxu0 %v159
    %211 = vmatprep.subr.mxu0 0.0
    %212 = vmatpush2.msra.mxu0 0.0
    %213 = vmatprep.subr.mxu0 0.0
    %214 = vmatpush2.msra.mxu0 0.0
    %215 = vmatprep.subr.mxu0 0.0
    %216 = vmatpush2.msra.mxu0 0.0
    %217 = vmatprep.subr.mxu0 0.0
    %218 = vmatpush2.msra.mxu0 0.0
    %219 = vmatprep.subr.mxu0 0.0
    %220 = vmatpush2.msra.mxu0 0.0
    %221 = vmatprep.subr.mxu0 0.0
    %222 = vmatpush2.msra.mxu0 0.0
    %223 = vmatprep.subr.mxu0 0.0
    %224 = vmatpush2.msra.mxu0 0.0
    %225 = vmatprep.subr.mxu0 0.0
    %226 = vmatpush2.msra.mxu0 0.0
    %227 = vmatprep.subr.mxu0 0.0
    %228 = vmatpush2.msra.mxu0 0.0
    %229 = vmatprep.subr.mxu0 0.0
    %230 = vmatpush2.msra.mxu0 0.0
    %231 = vmatprep.subr.mxu0 0.0
    %232 = vmatpush2.msra.mxu0 0.0
    %233 = vmatprep.subr.mxu0 0.0
    %234 = vmatpush2.msra.mxu0 0.0
    %235 = vmatprep.subr.mxu0 0.0
    %236 = vmatpush2.msra.mxu0 0.0
    %237 = vmatprep.subr.mxu0 0.0
    %238 = vmatpush2.msra.mxu0 0.0
    %239 = vmatprep.subr.mxu0 0.0
    %240 = vmatpush2.msra.mxu0 0.0
    %241 = vmatprep.subr.mxu0 0.0
    %242 = vmatpush2.msra.mxu0 0.0
    %243 = vmatprep.mubr.f32.mxu0 0.0
    %244 = vmatmul.mubr.f32.gmra.mxu0 %v177
    %v245 = vpop.f32.mrf.mxu0
    %v246 = vadd.f32 %v174, %v245
    %v247 = vpop.f32.mrf.mxu0
    %248 = vdwg.mxu0
    %vm249 = vcmask 130048
    %v250 = vsel %vm249, %v246, 0.0
    %v251 = vrot.slane %v250, 4
    %v252 = vadd.f32 %v250, %v251
    %v253 = vrot.slane %v252, 2
    %v254 = vadd.f32 %v252, %v253
    %v255 = vrot.slane %v254, 1
    %v256 = vadd.f32 %v254, %v255
    %v257 = vmul.f32 %v256, %v129
    %v258 = vsub.f32 %v246, %v257
    %v259 = vmul.f32 %v258, %v258
    %v260 = vsel %vm249, %v259, 0.0
    %v261 = vrot.slane %v260, 4
    %v262 = vadd.f32 %v260, %v261
    %v263 = vrot.slane %v262, 2
    %v264 = vadd.f32 %v262, %v263
    %v265 = vrot.slane %v264, 1
    %v266 = vadd.f32 %v264, %v265
    %v267 = vmul.f32 %v266, %v129
    %v268 = vadd.f32 %v267, 1e-05
    %v269 = vrsqrt.pop %v268
    %v270 = vmul.f32 %v258, %v269
    %v272 = vlaneseq
    %v273 = vshrl.u32 %v272, 7
    %v274 = vsub.s32 0, %v273
    %v275 = vrot.slane %v168, %v274
    %v277 = vmul.f32 %v270, %v275
    %v279 = vlaneseq
    %v280 = vshrl.u32 %v279, 7
    %v281 = vsub.s32 0, %v280
    %v282 = vrot.slane %v169, %v281
    %v284 = vadd.f32 %v277, %v282
    %285 = vst.msk [vmem:[#allocation2] sm:$0xff] %vm249, %v284
    // Predicated region
    $region38: #{tpu_custom_call.1} parent=1 // pred_check
      _
    $region39: #{tpu_custom_call.1} parent=1 // pred_check_branch
      %287 = sbr.rel (0) target = $region41
    $region40: #{tpu_custom_call.1} parent=1 // pred_region
      %s289 = ssub.s32 128, 128
      %290 = vsyncadd [#allocation3], %s289
      %s292 = sshll.u32 [#allocation2], 4
      %s293 = int_to_ptr.vmem [resolvable:$true] %s292
      %295 = dma.vmem_to_hbm [thread:$0]  %s293, 128, %s9, [#allocation3]
    $region41: #{tpu_custom_call.1} parent=1 // pred_fallthru
      _
    // Predicated region
    $region42: #{tpu_custom_call.1} parent=1 // pred_check
      _
    $region43: #{tpu_custom_call.1} parent=1 // pred_check_branch
      %297 = sbr.rel (0) target = $region45
    $region44: #{tpu_custom_call.1} parent=1 // pred_region
      %298 = dma.done [#allocation3], 128
    $region45: #{tpu_custom_call.1} parent=1 // pred_fallthru
      _
    %299 = vsyncpa [#allocation3], 1

</llo_original>
